<compile_context>
chip_gen: v7x
topology: tpu7x:2x2x1
jax: 0.10.0
libtpu: 0.0.40
codegen_flags: <defaults>
</compile_context>

<pallas_src>
import math

import jax
import jax.numpy as jnp
from jax.experimental import pallas as pl
from jax.experimental.pallas import tpu as pltpu

_SHIFT = math.log(2.0)  # same constant as torch.log(torch.tensor(2.0)).item()


def _shifted_softplus_kernel(x_ref, o_ref):
    # Upcast to f32 for the transcendental math (safe for bf16 I/O; v5e has no
    # bf16 VPU/EUP path anyway).
    x = x_ref[...].astype(jnp.float32)
    # Numerically stable softplus: max(x, 0) + log1p(exp(-|x|))
    sp = jnp.maximum(x, 0.0) + jnp.log1p(jnp.exp(-jnp.abs(x)))
    o_ref[...] = (sp - _SHIFT).astype(o_ref.dtype)


def shifted_softplus(
    x,
    *,
    block_rows=1024,
    lane_width=1024,
    min_pallas_elems=32 * 1024,
):
    """ShiftedSoftplus (softplus(x) - log 2), elementwise, via a Pallas TPU kernel.

    Accepts any shape / float dtype. Lane-aligned sizes take a zero-copy
    reshape path; tiny inputs fall back to plain XLA (fuses with the producer).
    """
    orig_shape = x.shape
    out_dtype = x.dtype
    n = int(x.size)

    # ---- Small-input fallback: a standalone kernel launch (plus any padding)
    # would dominate at this scale; let XLA fuse the elementwise math instead.
    if n == 0 or n < min_pallas_elems:
        xf = x.astype(jnp.float32)
        y = jnp.maximum(xf, 0.0) + jnp.log1p(jnp.exp(-jnp.abs(xf))) - _SHIFT
        return y.astype(out_dtype)

    itemsize = jnp.dtype(out_dtype).itemsize
    # Sublane alignment for the row-block: f32 -> 8, bf16/f16 -> 16, int8/fp8 -> 32.
    row_align = 8 if itemsize >= 4 else (16 if itemsize == 2 else 32)

    # Adaptive lane width: largest power-of-two multiple of 128 (<= lane_width)
    # dividing n, so the common case is a free reshape with unmasked stores.
    lw = lane_width
    while lw > 128 and n % lw != 0:
        lw //= 2

    flat = x.reshape(-1)
    if n % lw == 0:
        rows = n // lw
        x2d = flat.reshape(rows, lw)  # contiguous reshape: no copy
        padded = False
    else:
        # Unaligned tail: pad only up to lw-1 elements.
        # TODO(synk): jnp.pad / the final slice still cost a full HBM copy each;
        # the proper fix is fusing this activation into the producer's epilogue.
        rows = pl.cdiv(n, lw)
        x2d = jnp.pad(flat, (0, rows * lw - n)).reshape(rows, lw)
        padded = True

    # Row-block: multiple of the sublane alignment, capped at ~half the rows so
    # medium inputs yield >= 2 grid steps (keeps both v7x TensorCores busy),
    # while large inputs still get big tiles (<= block_rows) to amortize the
    # per-grid-step overhead.
    if rows <= row_align:
        br = rows  # block == full array dim -> always a legal block shape
    else:
        half = -(-rows // 2)                                # cdiv(rows, 2)
        half_aligned = -(-half // row_align) * row_align    # round up to align
        br = max(row_align, min(block_rows, half_aligned))
    grid = (pl.cdiv(rows, br),)

    # 2 arrays x 2 pipeline buffers live in VMEM; raise the scoped limit so a
    # 1024-row f32 tile (16 MiB live) also compiles on v5e's 16 MiB default.
    live_bytes = 4 * br * lw * itemsize
    vmem_limit = int(min(64 * 1024 * 1024, max(32 * 1024 * 1024, 2 * live_bytes)))

    y2d = pl.pallas_call(
        _shifted_softplus_kernel,
        out_shape=jax.ShapeDtypeStruct((rows, lw), out_dtype),
        grid=grid,
        in_specs=[pl.BlockSpec((br, lw), lambda i: (i, 0))],
        out_specs=pl.BlockSpec((br, lw), lambda i: (i, 0)),
        compiler_params=pltpu.CompilerParams(
            dimension_semantics=("parallel",),
            vmem_limit_bytes=vmem_limit,
        ),
    )(x2d)

    if not padded:
        return y2d.reshape(orig_shape)
    return y2d.reshape(-1)[:n].reshape(orig_shape)


if __name__ == "__main__":
    key = jax.random.PRNGKey(0)
    k1, k2, k3, k4 = jax.random.split(key, 4)

    def ref_fn(v):
        return jax.nn.softplus(v.astype(jnp.float32)) - _SHIFT

    # 1) SchNet-like f32 activation (16 nodes x 128 features), lane-aligned
    #    zero-copy path; force the Pallas kernel for this small size.
    x1 = jax.random.normal(k1, (16, 128), dtype=jnp.float32) * 3.0
    y1 = shifted_softplus(x1, min_pallas_elems=0)
    jax.block_until_ready(y1)
    assert y1.shape == x1.shape and y1.dtype == x1.dtype
    assert jnp.allclose(y1, ref_fn(x1), atol=1e-6, rtol=1e-6), "f32 mismatch"

    # 2) bf16 input with feature dim not a multiple of 128 -> small-tail pad path.
    x2 = (jax.random.normal(k2, (8, 24), dtype=jnp.float32) * 3.0).astype(jnp.bfloat16)
    y2 = shifted_softplus(x2, min_pallas_elems=0)
    jax.block_until_ready(y2)
    assert y2.shape == (8, 24) and y2.dtype == jnp.bfloat16
    y2_ref = ref_fn(x2).astype(jnp.bfloat16)
    assert jnp.allclose(
        y2.astype(jnp.float32), y2_ref.astype(jnp.float32), atol=2e-2, rtol=2e-2
    ), "bf16 mismatch"

    # 3) Multi-step grid (2 exactly-dividing row blocks) through the default wrapper.
    x3 = jax.random.normal(k3, (64, 1024), dtype=jnp.float32) * 3.0
    y3 = shifted_softplus(x3)
    jax.block_until_ready(y3)
    assert jnp.allclose(y3, ref_fn(x3), atol=1e-6, rtol=1e-6), "multi-block mismatch"

    # 4) Ragged last row-block (rows=36, block rows=24) -> masked boundary stores.
    x4 = jax.random.normal(k4, (36, 1024), dtype=jnp.float32) * 3.0
    y4 = shifted_softplus(x4, min_pallas_elems=0)
    jax.block_until_ready(y4)
    assert jnp.allclose(y4, ref_fn(x4), atol=1e-6, rtol=1e-6), "ragged-block mismatch"

    # 5) Small-input fallback path (pure XLA elementwise, fuses with producer).
    x5 = jax.random.normal(k1, (4, 32), dtype=jnp.float32)
    y5 = shifted_softplus(x5)
    jax.block_until_ready(y5)
    assert jnp.allclose(y5, ref_fn(x5), atol=1e-6, rtol=1e-6), "fallback mismatch"

    print("KERNEL_OK")
</pallas_src>

<mosaic_0001>
module attributes {stable_mosaic.version = 11 : i64} {
  func.func @_shifted_softplus_kernel(%arg0: i32, %arg1: memref<2x1024xf32, #tpu.memory_space<vmem>>, %arg2: memref<2x1024xf32, #tpu.memory_space<vmem>>) attributes {dimension_semantics = [#tpu.dimension_semantics<parallel>], iteration_bounds = array<i64: 1>, scalar_prefetch = 0 : i64, scratch_operands = 0 : i64, tpu.core_type = #tpu.core_type<tc>, window_params = [{transform_indices = @transform_0, window_bounds = array<i64: 2, 1024>}, {transform_indices = @transform_1, window_bounds = array<i64: 2, 1024>}]} {
    %c0 = arith.constant 0 : index
    %c0_0 = arith.constant 0 : index
    %0 = vector.load %arg1[%c0, %c0_0] : memref<2x1024xf32, #tpu.memory_space<vmem>>, vector<2x1024xf32>
    %cst = arith.constant 0.000000e+00 : f32
    %1 = vector.broadcast %cst : f32 to vector<2x1024xf32>
    %2 = arith.maximumf %0, %1 : vector<2x1024xf32>
    %3 = math.absf %0 : vector<2x1024xf32>
    %cst_1 = arith.constant 0.000000e+00 : f32
    %4 = vector.broadcast %cst_1 : f32 to vector<2x1024xf32>
    %5 = arith.subf %4, %3 : vector<2x1024xf32>
    %6 = math.exp %5 : vector<2x1024xf32>
    %7 = math.log1p %6 : vector<2x1024xf32>
    %8 = arith.addf %2, %7 : vector<2x1024xf32>
    %cst_2 = arith.constant 0.693147182 : f32
    %9 = vector.broadcast %cst_2 : f32 to vector<2x1024xf32>
    %10 = arith.subf %8, %9 : vector<2x1024xf32>
    %c0_3 = arith.constant 0 : index
    %c0_4 = arith.constant 0 : index
    %11 = vector.load %arg2[%c0_3, %c0_4] : memref<2x1024xf32, #tpu.memory_space<vmem>>, vector<2x1024xf32>
    tpu.vector_store %arg2[%c0_3, %c0_4], %10 {strides = array<i32>} : memref<2x1024xf32, #tpu.memory_space<vmem>>, vector<2x1024xf32>,
    return
  }
  func.func @transform_0(%arg0: i32) -> (i32, i32) {
    %c0_i32 = arith.constant 0 : i32
    %c0_i32_0 = arith.constant 0 : i32
    return %arg0, %c0_i32 : i32, i32
  }
  func.func @transform_1(%arg0: i32) -> (i32, i32) {
    %c0_i32 = arith.constant 0 : i32
    %c0_i32_0 = arith.constant 0 : i32
    return %arg0, %c0_i32 : i32, i32
  }
}

</mosaic_0001>

<llo_original>
// kernel: tpu_custom_call.1
$region0: #{tpu_custom_call.1}
  #allocation0 [shape = 'u32[]', space=smem, size = 0x4, offset = 0x4, fixed_abs, tag = 'smem constant byte address 0x4 - core index']
  #allocation1 [shape = 'u32[144,128]{1,0:T(1,128)}', space=vmem, size = 0x12000, scoped, tag = 'internal scratch']
  %s0 = inlined_call_operand.hbm [shape: f32[2,1024], index: 0, kind: input, shape index: {}]
  %s1 = inlined_call_operand.hbm [shape: f32[2,1024], index: 1, kind: output, shape index: {}]
  %s2 = sld [smem:[#allocation0]]
  $region18: #{tpu_custom_call.1} parent=0
    _
  %s4 = ssub.s32 1, %s2
  %s5 = scalar_select 0, %s4, %s2
  $region1: #{tpu_custom_call.1} parent=0
    #allocation2 [shape = 'u8[8192]{0}', space=vmem, size = 0x2000, scoped, tag = 'input window, operand 0, single buffered']
    #allocation3 [shape = 's32[1]{0}', space=sflag, size = 0x4, scoped, tag = 'scoped memory for tpu_custom_call.1']
    #allocation4 [shape = 's32[1]{0}', space=sflag, size = 0x4, scoped, tag = 'scoped memory for tpu_custom_call.1']
    #allocation5 [shape = 'u8[8192]{0}', space=vmem, size = 0x2000, scoped, tag = 'output window, operand 0, single buffered']
    %6 = vsyncpa [#allocation3], 0
    %7 = vsyncpa [#allocation4], 0
    // Predicated region
    $region2: #{tpu_custom_call.1} parent=1 // pred_check
      _
    $region3: #{tpu_custom_call.1} parent=1 // pred_check_branch
      %9 = sbr.rel (0) target = $region5
    $region4: #{tpu_custom_call.1} parent=1 // pred_region
      %s11 = ssub.s32 256, 256
      %12 = vsyncadd [#allocation3], %s11
      %s14 = sshll.u32 [#allocation2], 4
      %s15 = int_to_ptr.vmem [resolvable:$true] %s14
      %17 = dma.hbm_to_vmem [thread:$0]  %s0, 256, %s15, [#allocation3]
    $region5: #{tpu_custom_call.1} parent=1 // pred_fallthru
      _
    // Predicated region
    $region6: #{tpu_custom_call.1} parent=1 // pred_check
      _
    $region7: #{tpu_custom_call.1} parent=1 // pred_check_branch
      %19 = sbr.rel (0) target = $region9
    $region8: #{tpu_custom_call.1} parent=1 // pred_region
      %20 = dma.done [#allocation3], 256
    $region9: #{tpu_custom_call.1} parent=1 // pred_fallthru
      _
    %v21 = vld [vmem:[#allocation2] sm:$0xff]
    %v22 = vld [vmem:[#allocation2 + $0x8] sm:$0xff]
    %v23 = vmax.f32 %v21, 0.0
    %v24 = vmax.f32 %v22, 0.0
    %v25 = vand.u32 2147483647, %v21
    %v26 = vand.u32 2147483647, %v22
    %v27 = vsub.f32 0.0, %v25
    %v28 = vsub.f32 0.0, %v26
    %v29 = vmul.f32 %v27, 1.442695
    %v30 = vpow.pop %v29
    %v31 = vmul.f32 %v28, 1.442695
    %v32 = vpow.pop %v31
    %v33 = vadd.f32 %v30, 1.0
    %v34 = vlog2.pop %v33
    %v35 = vmul.f32 %v34, 0.6931472
    %v36 = vmul.f32 -0.5, %v30
    %v37 = vadd.f32 %v36, 1.0
    %v38 = vmul.f32 %v37, %v30
    %v39 = vand.u32 2147483647, %v30
    %vm40 = vcmp.lt.f32.partialorder %v39, 0.0004427343
    %v41 = vsel %vm40, %v38, %v35
    %v42 = vadd.f32 %v32, 1.0
    %v43 = vlog2.pop %v42
    %v44 = vmul.f32 %v43, 0.6931472
    %v45 = vmul.f32 -0.5, %v32
    %v46 = vadd.f32 %v45, 1.0
    %v47 = vmul.f32 %v46, %v32
    %v48 = vand.u32 2147483647, %v32
    %vm49 = vcmp.lt.f32.partialorder %v48, 0.0004427343
    %v50 = vsel %vm49, %v47, %v44
    %v51 = vadd.f32 %v23, %v41
    %v52 = vadd.f32 %v24, %v50
    %v53 = vsub.f32 %v51, 0.6931472
    %v54 = vsub.f32 %v52, 0.6931472
    %55 = vst [vmem:[#allocation5] sm:$0xff] %v53
    %56 = vst [vmem:[#allocation5 + $0x8] sm:$0xff] %v54
    // Predicated region
    $region10: #{tpu_custom_call.1} parent=1 // pred_check
      _
    $region11: #{tpu_custom_call.1} parent=1 // pred_check_branch
      %58 = sbr.rel (0) target = $region13
    $region12: #{tpu_custom_call.1} parent=1 // pred_region
      %s60 = ssub.s32 256, 256
      %61 = vsyncadd [#allocation4], %s60
      %s63 = sshll.u32 [#allocation5], 4
      %s64 = int_to_ptr.vmem [resolvable:$true] %s63
      %66 = dma.vmem_to_hbm [thread:$0]  %s64, 256, %s1, [#allocation4]
    $region13: #{tpu_custom_call.1} parent=1 // pred_fallthru
      _
    // Predicated region
    $region14: #{tpu_custom_call.1} parent=1 // pred_check
      _
    $region15: #{tpu_custom_call.1} parent=1 // pred_check_branch
      %68 = sbr.rel (0) target = $region17
    $region16: #{tpu_custom_call.1} parent=1 // pred_region
      %69 = dma.done [#allocation4], 256
    $region17: #{tpu_custom_call.1} parent=1 // pred_fallthru
      _
    %70 = vsyncpa [#allocation3], 1
    %71 = vsyncpa [#allocation4], 1

</llo_original>
